<compile_context>
chip_gen: v6e
topology: v6e:2x2x1
jax: 0.10.0
libtpu: 0.0.40
codegen_flags: <defaults>
</compile_context>

<pallas_src>
import jax
import jax.numpy as jnp
from jax.experimental import pallas as pl
from jax.experimental.pallas import tpu as pltpu

STATE_DIM = 12
ACTION_DIM = 4
D_IN = STATE_DIM + ACTION_DIM            # 16

# ---- packed-parameter slab layout (rows x 256 lanes, f32) -------------------
P_LANES = 256
W0_R0, W0_R1 = 0, 16                     # fused first-layer weights [16, 256]
B_ROW = 16                               # row 16: b0, 17: b1, 18: b2, 19: bf
W1_R0, W1_R1 = 24, 24 + 256              # W1 padded to [256, 128]
W2_R0, W2_R1 = 280, 280 + 128            # W2 padded to [128, 128]
WF_R0, WF_R1 = 408, 408 + 128            # Wf padded to [128, 128]
P_ROWS = 536                             # multiple of 8 (sublane aligned)


def pack_params(params):
    """Pack the 10 Actor parameters into one lane-dense, zero-padded slab."""
    ws, bs, wa, ba, w1, b1, w2, b2, wf, bf = params
    P = jnp.zeros((P_ROWS, P_LANES), jnp.float32)
    # fused first layer: lanes 0:128 = S branch, lanes 128:136 = A branch
    P = P.at[W0_R0:W0_R0 + STATE_DIM, 0:128].set(ws)           # [12,128]
    P = P.at[W0_R0 + STATE_DIM:W0_R1, 128:136].set(wa)         # [4,8]
    P = P.at[B_ROW, 0:128].set(bs.reshape(-1))
    P = P.at[B_ROW, 128:136].set(ba.reshape(-1))
    P = P.at[B_ROW + 1, 0:16].set(b1.reshape(-1))
    P = P.at[B_ROW + 2, 0:8].set(b2.reshape(-1))
    P = P.at[B_ROW + 3, 0:1].set(bf.reshape(-1))
    P = P.at[W1_R0:W1_R0 + 136, 0:16].set(w1)                  # [136,16]
    P = P.at[W2_R0:W2_R0 + 16, 0:8].set(w2)                    # [16,8]
    P = P.at[WF_R0:WF_R0 + 8, 0:1].set(wf)                     # [8,1]
    return P


# ---- kernel 1: MLP + online batch-softmax statistics ------------------------
def make_fwd_kernel(batch, tile_b, needs_mask):
    def fwd_kernel(x_ref, p_ref, f_ref, stats_ref, m_sc, l_sc):
        i = pl.program_id(0)

        @pl.when(i == 0)
        def _init():
            m_sc[...] = jnp.full((1, 128), -jnp.inf, jnp.float32)
            l_sc[...] = jnp.zeros((1, 128), jnp.float32)

        x = x_ref[...]                                  # [TB, 16]
        w0 = p_ref[W0_R0:W0_R1, :]                      # [16, 256]
        b0 = p_ref[B_ROW:B_ROW + 1, :]                  # [1, 256]
        b1 = p_ref[B_ROW + 1:B_ROW + 2, 0:128]
        b2 = p_ref[B_ROW + 2:B_ROW + 3, 0:128]
        bf = p_ref[B_ROW + 3:B_ROW + 4, 0:128]
        w1 = p_ref[W1_R0:W1_R1, 0:128]                  # [256, 128]
        w2 = p_ref[W2_R0:W2_R1, 0:128]                  # [128, 128]
        wf = p_ref[WF_R0:WF_R1, 0:128]                  # [128, 128]

        h0 = jnp.maximum(jnp.dot(x, w0, preferred_element_type=jnp.float32) + b0, 0.0)
        h1 = jnp.maximum(jnp.dot(h0, w1, preferred_element_type=jnp.float32) + b1, 0.0)
        h2 = jnp.maximum(jnp.dot(h1, w2, preferred_element_type=jnp.float32) + b2, 0.0)
        f = jnp.maximum(jnp.dot(h2, wf, preferred_element_type=jnp.float32) + bf, 0.0)
        # Reference adds +1.0 before softmax(dim=0); softmax is shift-invariant
        # so the add is mathematically dead and dropped here.

        f_ref[...] = f                                  # lane-dense [TB, 128]

        if needs_mask:
            row = jax.lax.broadcasted_iota(jnp.int32, f.shape, 0) + i * tile_b
            f = jnp.where(row < batch, f, -jnp.inf)     # exclude batch padding

        # online max / sum-of-exp over the batch axis (per lane; lane 0 real)
        tile_max = jnp.max(f, axis=0, keepdims=True)    # [1, 128]
        m_new = jnp.maximum(m_sc[...], tile_max)
        alpha = jnp.exp(m_sc[...] - m_new)
        l_sc[...] = alpha * l_sc[...] + jnp.sum(jnp.exp(f - m_new), axis=0,
                                                keepdims=True)
        m_sc[...] = m_new

        @pl.when(i == pl.num_programs(0) - 1)
        def _finalize():
            stats_ref[0:1, :] = m_sc[...]
            stats_ref[1:2, :] = l_sc[...]

    return fwd_kernel


# ---- kernel 2: normalization (embarrassingly parallel over batch tiles) -----
def norm_kernel(f_ref, stats_ref, o_ref):
    m = stats_ref[0:1, :]
    inv_l = pl.reciprocal(stats_ref[1:2, :], approx=True)
    o_ref[...] = jnp.exp(f_ref[...] - m) * inv_l


def _round_up(n, m):
    return ((n + m - 1) // m) * m


@jax.jit
def actor_forward(x, packed):
    B = x.shape[0]
    TB = 512 if B >= 512 else _round_up(B, 8)
    Bp = _round_up(B, TB)
    if Bp != B:
        x = jnp.pad(x, ((0, Bp - B), (0, 0)))
    n_tiles = Bp // TB

    fwd = make_fwd_kernel(B, TB, Bp != B)
    f, stats = pl.pallas_call(
        fwd,
        out_shape=(jax.ShapeDtypeStruct((Bp, 128), jnp.float32),
                   jax.ShapeDtypeStruct((2, 128), jnp.float32)),
        grid=(n_tiles,),
        in_specs=[pl.BlockSpec((TB, D_IN), lambda i: (i, 0)),
                  pl.BlockSpec((P_ROWS, P_LANES), lambda i: (0, 0))],
        out_specs=(pl.BlockSpec((TB, 128), lambda i: (i, 0)),
                   pl.BlockSpec((2, 128), lambda i: (0, 0))),
        scratch_shapes=[pltpu.VMEM((1, 128), jnp.float32),   # running max
                        pltpu.VMEM((1, 128), jnp.float32)],  # running sum
        compiler_params=pltpu.CompilerParams(
            dimension_semantics=("arbitrary",)),  # batch softmax couples tiles
        cost_estimate=pl.CostEstimate(
            flops=2 * Bp * (D_IN * 256 + 256 * 128 + 128 * 128 + 128 * 128),
            transcendentals=Bp * 128,
            bytes_accessed=4 * (Bp * D_IN + P_ROWS * P_LANES + Bp * 128 + 256)),
    )(x, packed)

    out = pl.pallas_call(
        norm_kernel,
        out_shape=jax.ShapeDtypeStruct((Bp, 128), jnp.float32),
        grid=(n_tiles,),
        in_specs=[pl.BlockSpec((TB, 128), lambda i: (i, 0)),
                  pl.BlockSpec((2, 128), lambda i: (0, 0))],
        out_specs=pl.BlockSpec((TB, 128), lambda i: (i, 0)),
        compiler_params=pltpu.CompilerParams(
            dimension_semantics=("parallel",)),
        cost_estimate=pl.CostEstimate(
            flops=2 * Bp * 128,
            transcendentals=Bp * 128,
            bytes_accessed=4 * (2 * Bp * 128 + 256)),
    )(f, stats)

    return out[:B, 0]                                   # squeeze(1) -> [B]


# ---- init + pure-JAX reference ----------------------------------------------
def init_params(key, state_dim, action_dim):
    """PyTorch-default-style init: U(-1/sqrt(fan_in), +1/sqrt(fan_in)); W is [in,out]."""
    def linear(key, fan_in, fan_out):
        kw, kb = jax.random.split(key)
        bound = 1.0 / jnp.sqrt(fan_in)
        w = jax.random.uniform(kw, (fan_in, fan_out), jnp.float32, -bound, bound)
        b = jax.random.uniform(kb, (1, fan_out), jnp.float32, -bound, bound)
        return w, b

    ks = jax.random.split(key, 5)
    ws, bs = linear(ks[0], state_dim, 128)
    wa, ba = linear(ks[1], action_dim, 8)
    w1, b1 = linear(ks[2], 128 + 8, 16)
    w2, b2 = linear(ks[3], 16, 8)
    wf, bf = linear(ks[4], 8, 1)
    return (ws, bs, wa, ba, w1, b1, w2, b2, wf, bf)


def actor_reference(x, params):
    ws, bs, wa, ba, w1, b1, w2, b2, wf, bf = params
    s1 = x[:, :STATE_DIM]
    a1 = x[:, -ACTION_DIM:]
    S1 = jax.nn.relu(s1 @ ws + bs)
    A1 = jax.nn.relu(a1 @ wa + ba)
    Y1 = jnp.concatenate([S1, A1], axis=1)
    l1 = jax.nn.relu(Y1 @ w1 + b1)
    l2 = jax.nn.relu(l1 @ w2 + b2)
    f = jax.nn.relu(l2 @ wf + bf) + 1.0
    return jax.nn.softmax(f, axis=0)[:, 0]


if __name__ == "__main__":
    key = jax.random.PRNGKey(0)
    k_x, k_p = jax.random.split(key)

    B = 8
    x = jax.random.normal(k_x, (B, D_IN), jnp.float32)
    params = init_params(k_p, STATE_DIM, ACTION_DIM)
    packed = pack_params(params)

    y = jax.block_until_ready(actor_forward(x, packed))
    y_ref = actor_reference(x, params)

    assert y.shape == (B,)
    # tolerance covers the approximate-EUP reciprocal in the normalization pass
    assert jnp.allclose(y, y_ref, atol=1e-3, rtol=1e-3), (y, y_ref)

    print("KERNEL_OK")
</pallas_src>

<mosaic_0001>
module attributes {stable_mosaic.version = 11 : i64} {
  func.func @fwd_kernel(%arg0: i32, %arg1: memref<8x16xf32, #tpu.memory_space<vmem>>, %arg2: memref<536x256xf32, #tpu.memory_space<vmem>>, %arg3: memref<8x128xf32, #tpu.memory_space<vmem>>, %arg4: memref<2x128xf32, #tpu.memory_space<vmem>>, %arg5: memref<1x128xf32, #tpu.memory_space<vmem>>, %arg6: memref<1x128xf32, #tpu.memory_space<vmem>>) attributes {dimension_semantics = [#tpu.dimension_semantics<arbitrary>], iteration_bounds = array<i64: 1>, scalar_prefetch = 0 : i64, scratch_operands = 2 : i64, tpu.core_type = #tpu.core_type<tc>, window_params = [{transform_indices = @transform_0, window_bounds = array<i64: 8, 16>}, {pipeline_mode = #tpu.pipeline_mode<synchronous>, transform_indices = @transform_1, window_bounds = array<i64: 536, 256>}, {transform_indices = @transform_2, window_bounds = array<i64: 8, 128>}, {pipeline_mode = #tpu.pipeline_mode<synchronous>, transform_indices = @transform_3, window_bounds = array<i64: 2, 128>}]} {
    %c0_i32 = arith.constant 0 : i32
    %0 = arith.cmpi eq, %arg0, %c0_i32 : i32
    %1 = arith.extui %0 : i1 to i32
    %c0_i32_0 = arith.constant 0 : i32
    %2 = arith.cmpi ne, %1, %c0_i32_0 : i32
    scf.if %2 {
      %cst_34 = arith.constant 0xFF800000 : f32
      %53 = vector.broadcast %cst_34 : f32 to vector<1x128xf32>
      %c0_35 = arith.constant 0 : index
      %c0_36 = arith.constant 0 : index
      %54 = vector.load %arg5[%c0_35, %c0_36] : memref<1x128xf32, #tpu.memory_space<vmem>>, vector<1x128xf32>
      tpu.vector_store %arg5[%c0_35, %c0_36], %53 {strides = array<i32>} : memref<1x128xf32, #tpu.memory_space<vmem>>, vector<1x128xf32>,
      %cst_37 = arith.constant 0.000000e+00 : f32
      %55 = vector.broadcast %cst_37 : f32 to vector<1x128xf32>
      %c0_38 = arith.constant 0 : index
      %c0_39 = arith.constant 0 : index
      %56 = vector.load %arg6[%c0_38, %c0_39] : memref<1x128xf32, #tpu.memory_space<vmem>>, vector<1x128xf32>
      tpu.vector_store %arg6[%c0_38, %c0_39], %55 {strides = array<i32>} : memref<1x128xf32, #tpu.memory_space<vmem>>, vector<1x128xf32>,
    } else {
    }
    %c0 = arith.constant 0 : index
    %c0_1 = arith.constant 0 : index
    %3 = vector.load %arg1[%c0, %c0_1] : memref<8x16xf32, #tpu.memory_space<vmem>>, vector<8x16xf32>
    %c0_2 = arith.constant 0 : index
    %c0_3 = arith.constant 0 : index
    %4 = vector.load %arg2[%c0_2, %c0_3] : memref<536x256xf32, #tpu.memory_space<vmem>>, vector<16x256xf32>
    %c16 = arith.constant 16 : index
    %c0_4 = arith.constant 0 : index
    %5 = vector.load %arg2[%c16, %c0_4] : memref<536x256xf32, #tpu.memory_space<vmem>>, vector<1x256xf32>
    %c17 = arith.constant 17 : index
    %c0_5 = arith.constant 0 : index
    %6 = vector.load %arg2[%c17, %c0_5] : memref<536x256xf32, #tpu.memory_space<vmem>>, vector<1x128xf32>
    %c18 = arith.constant 18 : index
    %c0_6 = arith.constant 0 : index
    %7 = vector.load %arg2[%c18, %c0_6] : memref<536x256xf32, #tpu.memory_space<vmem>>, vector<1x128xf32>
    %c19 = arith.constant 19 : index
    %c0_7 = arith.constant 0 : index
    %8 = vector.load %arg2[%c19, %c0_7] : memref<536x256xf32, #tpu.memory_space<vmem>>, vector<1x128xf32>
    %c24 = arith.constant 24 : index
    %c0_8 = arith.constant 0 : index
    %9 = vector.load %arg2[%c24, %c0_8] : memref<536x256xf32, #tpu.memory_space<vmem>>, vector<256x128xf32>
    %c280 = arith.constant 280 : index
    %c0_9 = arith.constant 0 : index
    %10 = vector.load %arg2[%c280, %c0_9] : memref<536x256xf32, #tpu.memory_space<vmem>>, vector<128x128xf32>
    %c408 = arith.constant 408 : index
    %c0_10 = arith.constant 0 : index
    %11 = vector.load %arg2[%c408, %c0_10] : memref<536x256xf32, #tpu.memory_space<vmem>>, vector<128x128xf32>
    %cst = arith.constant dense<0.000000e+00> : vector<8x256xf32>
    %12 = tpu.matmul %3, %4, %cst {dimension_numbers = #tpu.dot_dimension_numbers<[1], [0], [0], [1], [0, 0, 1, 1], [], []>} : vector<8x16xf32>, vector<16x256xf32>, vector<8x256xf32> -> vector<8x256xf32>
    %13 = vector.broadcast %5 : vector<1x256xf32> to vector<8x256xf32>
    %14 = arith.addf %12, %13 : vector<8x256xf32>
    %cst_11 = arith.constant 0.000000e+00 : f32
    %15 = vector.broadcast %cst_11 : f32 to vector<8x256xf32>
    %16 = arith.maximumf %14, %15 : vector<8x256xf32>
    %cst_12 = arith.constant dense<0.000000e+00> : vector<8x128xf32>
    %17 = tpu.matmul %16, %9, %cst_12 {dimension_numbers = #tpu.dot_dimension_numbers<[1], [0], [0], [1], [0, 0, 1, 1], [], []>} : vector<8x256xf32>, vector<256x128xf32>, vector<8x128xf32> -> vector<8x128xf32>
    %18 = vector.broadcast %6 : vector<1x128xf32> to vector<8x128xf32>
    %19 = arith.addf %17, %18 : vector<8x128xf32>
    %cst_13 = arith.constant 0.000000e+00 : f32
    %20 = vector.broadcast %cst_13 : f32 to vector<8x128xf32>
    %21 = arith.maximumf %19, %20 : vector<8x128xf32>
    %cst_14 = arith.constant dense<0.000000e+00> : vector<8x128xf32>
    %22 = tpu.matmul %21, %10, %cst_14 {dimension_numbers = #tpu.dot_dimension_numbers<[1], [0], [0], [1], [0, 0, 1, 1], [], []>} : vector<8x128xf32>, vector<128x128xf32>, vector<8x128xf32> -> vector<8x128xf32>
    %23 = vector.broadcast %7 : vector<1x128xf32> to vector<8x128xf32>
    %24 = arith.addf %22, %23 : vector<8x128xf32>
    %cst_15 = arith.constant 0.000000e+00 : f32
    %25 = vector.broadcast %cst_15 : f32 to vector<8x128xf32>
    %26 = arith.maximumf %24, %25 : vector<8x128xf32>
    %cst_16 = arith.constant dense<0.000000e+00> : vector<8x128xf32>
    %27 = tpu.matmul %26, %11, %cst_16 {dimension_numbers = #tpu.dot_dimension_numbers<[1], [0], [0], [1], [0, 0, 1, 1], [], []>} : vector<8x128xf32>, vector<128x128xf32>, vector<8x128xf32> -> vector<8x128xf32>
    %28 = vector.broadcast %8 : vector<1x128xf32> to vector<8x128xf32>
    %29 = arith.addf %27, %28 : vector<8x128xf32>
    %cst_17 = arith.constant 0.000000e+00 : f32
    %30 = vector.broadcast %cst_17 : f32 to vector<8x128xf32>
    %31 = arith.maximumf %29, %30 : vector<8x128xf32>
    %c0_18 = arith.constant 0 : index
    %c0_19 = arith.constant 0 : index
    %32 = vector.load %arg3[%c0_18, %c0_19] : memref<8x128xf32, #tpu.memory_space<vmem>>, vector<8x128xf32>
    tpu.vector_store %arg3[%c0_18, %c0_19], %31 {strides = array<i32>} : memref<8x128xf32, #tpu.memory_space<vmem>>, vector<8x128xf32>,
    %cst_20 = arith.constant dense<0xFF800000> : vector<128xf32>
    %33 = vector.multi_reduction <maximumf>, %31, %cst_20 [0] : vector<8x128xf32> to vector<128xf32>
    %34 = vector.shape_cast %33 : vector<128xf32> to vector<1x128xf32>
    %c0_21 = arith.constant 0 : index
    %c0_22 = arith.constant 0 : index
    %35 = vector.load %arg5[%c0_21, %c0_22] : memref<1x128xf32, #tpu.memory_space<vmem>>, vector<1x128xf32>
    %36 = arith.maximumf %35, %34 : vector<1x128xf32>
    %c0_23 = arith.constant 0 : index
    %c0_24 = arith.constant 0 : index
    %37 = vector.load %arg5[%c0_23, %c0_24] : memref<1x128xf32, #tpu.memory_space<vmem>>, vector<1x128xf32>
    %38 = arith.subf %37, %36 : vector<1x128xf32>
    %39 = math.exp %38 : vector<1x128xf32>
    %c0_25 = arith.constant 0 : index
    %c0_26 = arith.constant 0 : index
    %40 = vector.load %arg6[%c0_25, %c0_26] : memref<1x128xf32, #tpu.memory_space<vmem>>, vector<1x128xf32>
    %41 = arith.mulf %39, %40 : vector<1x128xf32>
    %42 = vector.broadcast %36 : vector<1x128xf32> to vector<8x128xf32>
    %43 = arith.subf %31, %42 : vector<8x128xf32>
    %44 = math.exp %43 : vector<8x128xf32>
    %cst_27 = arith.constant dense<0.000000e+00> : vector<128xf32>
    %45 = vector.multi_reduction <add>, %44, %cst_27 [0] : vector<8x128xf32> to vector<128xf32>
    %46 = vector.shape_cast %45 : vector<128xf32> to vector<1x128xf32>
    %47 = arith.addf %41, %46 : vector<1x128xf32>
    %c0_28 = arith.constant 0 : index
    %c0_29 = arith.constant 0 : index
    %48 = vector.load %arg6[%c0_28, %c0_29] : memref<1x128xf32, #tpu.memory_space<vmem>>, vector<1x128xf32>
    tpu.vector_store %arg6[%c0_28, %c0_29], %47 {strides = array<i32>} : memref<1x128xf32, #tpu.memory_space<vmem>>, vector<1x128xf32>,
    %c0_30 = arith.constant 0 : index
    %c0_31 = arith.constant 0 : index
    %49 = vector.load %arg5[%c0_30, %c0_31] : memref<1x128xf32, #tpu.memory_space<vmem>>, vector<1x128xf32>
    tpu.vector_store %arg5[%c0_30, %c0_31], %36 {strides = array<i32>} : memref<1x128xf32, #tpu.memory_space<vmem>>, vector<1x128xf32>,
    %c0_i32_32 = arith.constant 0 : i32
    %50 = arith.cmpi eq, %arg0, %c0_i32_32 : i32
    %51 = arith.extui %50 : i1 to i32
    %c0_i32_33 = arith.constant 0 : i32
    %52 = arith.cmpi ne, %51, %c0_i32_33 : i32
    scf.if %52 {
      %c0_34 = arith.constant 0 : index
      %c0_35 = arith.constant 0 : index
      %53 = vector.load %arg5[%c0_34, %c0_35] : memref<1x128xf32, #tpu.memory_space<vmem>>, vector<1x128xf32>
      %c0_36 = arith.constant 0 : index
      %c0_37 = arith.constant 0 : index
      %54 = vector.load %arg4[%c0_36, %c0_37] : memref<2x128xf32, #tpu.memory_space<vmem>>, vector<1x128xf32>
      tpu.vector_store %arg4[%c0_36, %c0_37], %53 {strides = array<i32>} : memref<2x128xf32, #tpu.memory_space<vmem>>, vector<1x128xf32>,
      %c0_38 = arith.constant 0 : index
      %c0_39 = arith.constant 0 : index
      %55 = vector.load %arg6[%c0_38, %c0_39] : memref<1x128xf32, #tpu.memory_space<vmem>>, vector<1x128xf32>
      %c1 = arith.constant 1 : index
      %c0_40 = arith.constant 0 : index
      %56 = vector.load %arg4[%c1, %c0_40] : memref<2x128xf32, #tpu.memory_space<vmem>>, vector<1x128xf32>
      tpu.vector_store %arg4[%c1, %c0_40], %55 {strides = array<i32>} : memref<2x128xf32, #tpu.memory_space<vmem>>, vector<1x128xf32>,
    } else {
    }
    return
  }
  func.func @transform_0(%arg0: i32) -> (i32, i32) {
    %c0_i32 = arith.constant 0 : i32
    %c0_i32_0 = arith.constant 0 : i32
    return %arg0, %c0_i32 : i32, i32
  }
  func.func @transform_1(%arg0: i32) -> (i32, i32) {
    %c0_i32 = arith.constant 0 : i32
    %c0_i32_0 = arith.constant 0 : i32
    %c0_i32_1 = arith.constant 0 : i32
    return %c0_i32, %c0_i32_0 : i32, i32
  }
  func.func @transform_2(%arg0: i32) -> (i32, i32) {
    %c0_i32 = arith.constant 0 : i32
    %c0_i32_0 = arith.constant 0 : i32
    return %arg0, %c0_i32 : i32, i32
  }
  func.func @transform_3(%arg0: i32) -> (i32, i32) {
    %c0_i32 = arith.constant 0 : i32
    %c0_i32_0 = arith.constant 0 : i32
    %c0_i32_1 = arith.constant 0 : i32
    return %c0_i32, %c0_i32_0 : i32, i32
  }
}

module attributes {stable_mosaic.version = 11 : i64} {
  func.func @norm_kernel(%arg0: i32, %arg1: memref<8x128xf32, #tpu.memory_space<vmem>>, %arg2: memref<2x128xf32, #tpu.memory_space<vmem>>, %arg3: memref<8x128xf32, #tpu.memory_space<vmem>>) attributes {dimension_semantics = [#tpu.dimension_semantics<parallel>], iteration_bounds = array<i64: 1>, scalar_prefetch = 0 : i64, scratch_operands = 0 : i64, tpu.core_type = #tpu.core_type<tc>, window_params = [{transform_indices = @transform_0, window_bounds = array<i64: 8, 128>}, {pipeline_mode = #tpu.pipeline_mode<synchronous>, transform_indices = @transform_1, window_bounds = array<i64: 2, 128>}, {transform_indices = @transform_2, window_bounds = array<i64: 8, 128>}]} {
    %c0 = arith.constant 0 : index
    %c0_0 = arith.constant 0 : index
    %0 = vector.load %arg2[%c0, %c0_0] : memref<2x128xf32, #tpu.memory_space<vmem>>, vector<1x128xf32>
    %c1 = arith.constant 1 : index
    %c0_1 = arith.constant 0 : index
    %1 = vector.load %arg2[%c1, %c0_1] : memref<2x128xf32, #tpu.memory_space<vmem>>, vector<1x128xf32>
    %2 = tpu.reciprocal %1 {approx = true} : vector<1x128xf32> -> vector<1x128xf32>
    %c0_2 = arith.constant 0 : index
    %c0_3 = arith.constant 0 : index
    %3 = vector.load %arg1[%c0_2, %c0_3] : memref<8x128xf32, #tpu.memory_space<vmem>>, vector<8x128xf32>
    %4 = vector.broadcast %0 : vector<1x128xf32> to vector<8x128xf32>
    %5 = arith.subf %3, %4 : vector<8x128xf32>
    %6 = math.exp %5 : vector<8x128xf32>
    %7 = vector.broadcast %2 : vector<1x128xf32> to vector<8x128xf32>
    %8 = arith.mulf %6, %7 : vector<8x128xf32>
    %c0_4 = arith.constant 0 : index
    %c0_5 = arith.constant 0 : index
    %9 = vector.load %arg3[%c0_4, %c0_5] : memref<8x128xf32, #tpu.memory_space<vmem>>, vector<8x128xf32>
    tpu.vector_store %arg3[%c0_4, %c0_5], %8 {strides = array<i32>} : memref<8x128xf32, #tpu.memory_space<vmem>>, vector<8x128xf32>,
    return
  }
  func.func @transform_0(%arg0: i32) -> (i32, i32) {
    %c0_i32 = arith.constant 0 : i32
    %c0_i32_0 = arith.constant 0 : i32
    return %arg0, %c0_i32 : i32, i32
  }
  func.func @transform_1(%arg0: i32) -> (i32, i32) {
    %c0_i32 = arith.constant 0 : i32
    %c0_i32_0 = arith.constant 0 : i32
    %c0_i32_1 = arith.constant 0 : i32
    return %c0_i32, %c0_i32_0 : i32, i32
  }
  func.func @transform_2(%arg0: i32) -> (i32, i32) {
    %c0_i32 = arith.constant 0 : i32
    %c0_i32_0 = arith.constant 0 : i32
    return %arg0, %c0_i32 : i32, i32
  }
}

</mosaic_0001>

<llo_original>
// kernel: actor_forward.3
$region0: #{actor_forward.3}
  #allocation0 [shape = 'u32[]', space=smem, size = 0x4, offset = 0x4, fixed_abs, tag = 'smem constant byte address 0x4 - core index']
  #allocation1 [shape = 'u32[144,128]{1,0:T(1,128)}', space=vmem, size = 0x12000, scoped, tag = 'internal scratch']
  %s0 = inlined_call_operand.vmem [shape: f32[8,128], index: 0, kind: input, shape index: {}]
  %s1 = inlined_call_operand.vmem [shape: f32[2,128], index: 1, kind: input, shape index: {}]
  %s2 = inlined_call_operand.vmem [shape: f32[8,128], index: 2, kind: output, shape index: {}]
  %s3 = sld [smem:[#allocation0]]
  $region18: #{actor_forward.3} parent=0
    _
  %s5 = ssub.s32 1, %s3
  %s6 = scalar_select 0, %s5, %s3
  // Predicated region
  $region2: #{actor_forward.3} parent=0 // pred_check
    _
  $region3: #{actor_forward.3} parent=0 // pred_check_branch
    %8 = sbr.rel (0) target = $region5
  $region4: #{actor_forward.3} parent=0 // pred_region
    _
  $region5: #{actor_forward.3} parent=0 // pred_fallthru
    _
  // Predicated region
  $region6: #{actor_forward.3} parent=0 // pred_check
    _
  $region7: #{actor_forward.3} parent=0 // pred_check_branch
    %10 = sbr.rel (0) target = $region9
  $region8: #{actor_forward.3} parent=0 // pred_region
    _
  $region9: #{actor_forward.3} parent=0 // pred_fallthru
    _
  %v11 = vld [vmem:[%s1] sm:$0x1]
  %v12 = vld [vmem:[%s1 + $0x1] sm:$0x1]
  %v13 = vrcp.pop %v12
  %v14 = vld [vmem:[%s0] sm:$0xff]
  %v15 = vlaneseq
  %v16 = vshrl.u32 %v15, 7
  %v17 = vsub.s32 0, %v16
  %v18 = vrot.slane %v11, %v17
  %v19 = vsub.f32 %v14, %v18
  %v20 = vmul.f32 %v19, 1.442695
  %v21 = vpow.pop %v20
  %v22 = vlaneseq
  %v23 = vshrl.u32 %v22, 7
  %v24 = vsub.s32 0, %v23
  %v25 = vrot.slane %v13, %v24
  %v26 = vmul.f32 %v21, %v25
  %27 = vst [vmem:[%s2] sm:$0xff] %v26
  // Predicated region
  $region10: #{actor_forward.3} parent=0 // pred_check
    _
  $region11: #{actor_forward.3} parent=0 // pred_check_branch
    %29 = sbr.rel (0) target = $region13
  $region12: #{actor_forward.3} parent=0 // pred_region
    _
  $region13: #{actor_forward.3} parent=0 // pred_fallthru
    _
  // Predicated region
  $region14: #{actor_forward.3} parent=0 // pred_check
    _
  $region15: #{actor_forward.3} parent=0 // pred_check_branch
    %31 = sbr.rel (0) target = $region17
  $region16: #{actor_forward.3} parent=0 // pred_region
    _
  $region17: #{actor_forward.3} parent=0 // pred_fallthru
    _

// kernel: actor_forward.2
$region0: #{actor_forward.2}
  #allocation0 [shape = 'u32[]', space=smem, size = 0x4, offset = 0x4, fixed_abs, tag = 'smem constant byte address 0x4 - core index']
  #allocation1 [shape = 'u32[144,128]{1,0:T(1,128)}', space=vmem, size = 0x12000, scoped, tag = 'internal scratch']
  #allocation2 [shape = 'f32[1,128]{1,0:T(1,128)}', space=vmem, size = 0x200, scoped, tag = 'scratch operand']
  #allocation3 [shape = 'f32[1,128]{1,0:T(1,128)}', space=vmem, size = 0x200, scoped, tag = 'scratch operand']
  %s0 = inlined_call_operand.hbm [shape: f32[8,16], index: 0, kind: input, shape index: {}]
  %s1 = inlined_call_operand.hbm [shape: f32[536,256], index: 1, kind: input, shape index: {}]
  %s2 = inlined_call_operand.vmem [shape: f32[8,128], index: 2, kind: output, shape index: {0}]
  %s3 = inlined_call_operand.vmem [shape: f32[2,128], index: 3, kind: output, shape index: {1}]
  %4 = xla_tuple %s2, %s3
  %s5 = sld [smem:[#allocation0]]
  $region42: #{actor_forward.2} parent=0
    _
  %s7 = ssub.s32 1, %s5
  %s8 = scalar_select 0, %s7, %s5
  $region1: #{actor_forward.2} parent=0
    #allocation4 [shape = 'u8[4096]{0}', space=vmem, size = 0x1000, scoped, tag = 'input window, operand 0, single buffered']
    #allocation5 [shape = 's32[1]{0}', space=sflag, size = 0x4, scoped, tag = 'scoped memory for actor_forward.2']
    #allocation6 [shape = 'u8[548864]{0}', space=vmem, size = 0x86000, scoped, tag = 'input window, operand 1, single buffered']
    #allocation7 [shape = 's32[1]{0}', space=sflag, size = 0x4, scoped, tag = 'scoped memory for actor_forward.2']
    %9 = vsyncpa [#allocation5], 0
    %10 = vsyncpa [#allocation7], 0
    // Predicated region
    $region2: #{actor_forward.2} parent=1 // pred_check
      _
    $region3: #{actor_forward.2} parent=1 // pred_check_branch
      %12 = sbr.rel (0) target = $region5
    $region4: #{actor_forward.2} parent=1 // pred_region
      %s14 = ssub.s32 128, 128
      %15 = vsyncadd [#allocation5], %s14
      %s17 = sshll.u32 [#allocation4], 4
      %s18 = int_to_ptr.vmem [resolvable:$true] %s17
      %20 = dma.hbm_to_vmem [thread:$0]  %s0, 128, %s18, [#allocation5]
    $region5: #{actor_forward.2} parent=1 // pred_fallthru
      _
    // Predicated region
    $region6: #{actor_forward.2} parent=1 // pred_check
      _
    $region7: #{actor_forward.2} parent=1 // pred_check_branch
      %22 = sbr.rel (0) target = $region9
    $region8: #{actor_forward.2} parent=1 // pred_region
      %s24 = ssub.s32 17152, 17152
      %25 = vsyncadd [#allocation7], %s24
      %s26 = sshll.u32 [#allocation6], 4
      %s27 = int_to_ptr.vmem [resolvable:$true] %s26
      %32 = dma.hbm_to_vmem [thread:$0]  %s1, 17152, %s27, [#allocation7], 256, 256, 16
    $region9: #{actor_forward.2} parent=1 // pred_fallthru
      _
    // Predicated region
    $region10: #{actor_forward.2} parent=1 // pred_check
      _
    $region11: #{actor_forward.2} parent=1 // pred_check_branch
      %34 = sbr.rel (0) target = $region13
    $region12: #{actor_forward.2} parent=1 // pred_region
      %35 = dma.done [#allocation5], 128
    $region13: #{actor_forward.2} parent=1 // pred_fallthru
      _
    // Predicated region
    $region14: #{actor_forward.2} parent=1 // pred_check
      _
    $region15: #{actor_forward.2} parent=1 // pred_check_branch
      %37 = sbr.rel (0) target = $region17
    $region16: #{actor_forward.2} parent=1 // pred_region
      %38 = dma.done [#allocation7], 17152
    $region17: #{actor_forward.2} parent=1 // pred_fallthru
      _
    %p39 = scmp.eq.s32.totalorder 0, 0
    // Predicated region
    $region18: #{actor_forward.2} parent=1 // pred_check
      %p40 = pneg %p39
    $region19: #{actor_forward.2} parent=1 // pred_check_branch
      %42 = sbr.rel (%p40) target = $region21
    $region20: #{actor_forward.2} parent=1 // pred_region
      %43 = vst [vmem:[#allocation2] sm:$0x1] -inf
      %44 = vst [vmem:[#allocation3] sm:$0x1] 0.0
    $region21: #{actor_forward.2} parent=1 // pred_fallthru
      _
    %v45 = vld [vmem:[#allocation4] sm:$0xff]
    %v46 = vld [vmem:[#allocation6] sm:$0xff]
    %v47 = vld [vmem:[#allocation6 + $0x8] sm:$0xff]
    %v48 = vld [vmem:[#allocation6 + $0x10] sm:$0xff]
    %v49 = vld [vmem:[#allocation6 + $0x18] sm:$0xff]
    %s50 = scalar_lea.vmem [#allocation6], 32
    %v51 = vld [vmem:[%s50] ss:$8 sm:$0x3]
    %v52 = vld [vmem:[#allocation6 + $0x21] ss:$0 sm:$0xff]
    %v53 = vld [vmem:[#allocation6 + $0x22] ss:$0 sm:$0xff]
    %v54 = vld [vmem:[#allocation6 + $0x23] ss:$0 sm:$0xff]
    %v55 = vld [vmem:[#allocation6 + $0x30] sm:$0xff]
    %v56 = vld [vmem:[#allocation6 + $0x40] sm:$0xff]
    %v57 = vld [vmem:[#allocation6 + $0x50] sm:$0xff]
    %v58 = vld [vmem:[#allocation6 + $0x60] sm:$0xff]
    %v59 = vld [vmem:[#allocation6 + $0x70] sm:$0xff]
    %v60 = vld [vmem:[#allocation6 + $0x80] sm:$0xff]
    %v61 = vld [vmem:[#allocation6 + $0x90] sm:$0xff]
    %v62 = vld [vmem:[#allocation6 + $0xa0] sm:$0xff]
    %v63 = vld [vmem:[#allocation6 + $0xb0] sm:$0xff]
    %v64 = vld [vmem:[#allocation6 + $0xc0] sm:$0xff]
    %v65 = vld [vmem:[#allocation6 + $0xd0] sm:$0xff]
    %v66 = vld [vmem:[#allocation6 + $0xe0] sm:$0xff]
    %v67 = vld [vmem:[#allocation6 + $0xf0] sm:$0xff]
    %v68 = vld [vmem:[#allocation6 + $0x100] sm:$0xff]
    %v69 = vld [vmem:[#allocation6 + $0x110] sm:$0xff]
    %v70 = vld [vmem:[#allocation6 + $0x120] sm:$0xff]
    %v71 = vld [vmem:[#allocation6 + $0x130] sm:$0xff]
    %v72 = vld [vmem:[#allocation6 + $0x140] sm:$0xff]
    %v73 = vld [vmem:[#allocation6 + $0x150] sm:$0xff]
    %v74 = vld [vmem:[#allocation6 + $0x160] sm:$0xff]
    %v75 = vld [vmem:[#allocation6 + $0x170] sm:$0xff]
    %v76 = vld [vmem:[#allocation6 + $0x180] sm:$0xff]
    %v77 = vld [vmem:[#allocation6 + $0x190] sm:$0xff]
    %v78 = vld [vmem:[#allocation6 + $0x1a0] sm:$0xff]
    %v79 = vld [vmem:[#allocation6 + $0x1b0] sm:$0xff]
    %v80 = vld [vmem:[#allocation6 + $0x1c0] sm:$0xff]
    %v81 = vld [vmem:[#allocation6 + $0x1d0] sm:$0xff]
    %v82 = vld [vmem:[#allocation6 + $0x1e0] sm:$0xff]
    %v83 = vld [vmem:[#allocation6 + $0x1f0] sm:$0xff]
    %v84 = vld [vmem:[#allocation6 + $0x200] sm:$0xff]
    %v85 = vld [vmem:[#allocation6 + $0x210] sm:$0xff]
    %v86 = vld [vmem:[#allocation6 + $0x220] sm:$0xff]
    %v87 = vld [vmem:[#allocation6 + $0x230] sm:$0xff]
    %v88 = vld [vmem:[#allocation6 + $0x240] sm:$0xff]
    %v89 = vld [vmem:[#allocation6 + $0x250] sm:$0xff]
    %v90 = vld [vmem:[#allocation6 + $0x260] sm:$0xff]
    %v91 = vld [vmem:[#allocation6 + $0x270] sm:$0xff]
    %v92 = vld [vmem:[#allocation6 + $0x280] sm:$0xff]
    %v93 = vld [vmem:[#allocation6 + $0x290] sm:$0xff]
    %v94 = vld [vmem:[#allocation6 + $0x2a0] sm:$0xff]
    %v95 = vld [vmem:[#allocation6 + $0x2b0] sm:$0xff]
    %v96 = vld [vmem:[#allocation6 + $0x2c0] sm:$0xff]
    %v97 = vld [vmem:[#allocation6 + $0x2d0] sm:$0xff]
    %v98 = vld [vmem:[#allocation6 + $0x2e0] sm:$0xff]
    %v99 = vld [vmem:[#allocation6 + $0x2f0] sm:$0xff]
    %v100 = vld [vmem:[#allocation6 + $0x300] sm:$0xff]
    %v101 = vld [vmem:[#allocation6 + $0x310] sm:$0xff]
    %v102 = vld [vmem:[#allocation6 + $0x320] sm:$0xff]
    %v103 = vld [vmem:[#allocation6 + $0x330] sm:$0xff]
    %v104 = vld [vmem:[#allocation6 + $0x340] sm:$0xff]
    %v105 = vld [vmem:[#allocation6 + $0x350] sm:$0xff]
    %v106 = vld [vmem:[#allocation6 + $0x360] sm:$0xff]
    %v107 = vld [vmem:[#allocation6 + $0x370] sm:$0xff]
    %v108 = vld [vmem:[#allocation6 + $0x380] sm:$0xff]
    %v109 = vld [vmem:[#allocation6 + $0x390] sm:$0xff]
    %v110 = vld [vmem:[#allocation6 + $0x3a0] sm:$0xff]
    %v111 = vld [vmem:[#allocation6 + $0x3b0] sm:$0xff]
    %v112 = vld [vmem:[#allocation6 + $0x3c0] sm:$0xff]
    %v113 = vld [vmem:[#allocation6 + $0x3d0] sm:$0xff]
    %v114 = vld [vmem:[#allocation6 + $0x3e0] sm:$0xff]
    %v115 = vld [vmem:[#allocation6 + $0x3f0] sm:$0xff]
    %v116 = vld [vmem:[#allocation6 + $0x400] sm:$0xff]
    %v117 = vld [vmem:[#allocation6 + $0x410] sm:$0xff]
    %v118 = vld [vmem:[#allocation6 + $0x420] sm:$0xff]
    %v120 = vlaneseq
    %v121 = vshrl.u32 %v120, 7
    %v122 = vsub.s32 0, %v121
    %v123 = vrot.slane %v51, %v122
    %v124 = vlaneseq
    %v125 = vshrl.u32 %v124, 7
    %v126 = vsub.s32 1, %v125
    %v127 = vrot.slane %v51, %v126
    %vm130 = vcmask 130048
    %v132 = vsel %vm130, %v45, 0
    %134 = vmatprep.subr.mxu0 0.0
    %135 = vmatpush1.msra.mxu0 0.0
    %136 = vmatprep.subr.mxu0 0.0
    %137 = vmatpush1.msra.mxu0 0.0
    %138 = vmatprep.subr.mxu0 0.0
    %139 = vmatpush1.msra.mxu0 0.0
    %140 = vmatprep.subr.mxu0 0.0
    %141 = vmatpush1.msra.mxu0 0.0
    %142 = vmatprep.subr.mxu0 0.0
    %143 = vmatpush1.msra.mxu0 0.0
    %144 = vmatprep.subr.mxu0 0.0
    %145 = vmatpush1.msra.mxu0 0.0
    %146 = vmatprep.subr.mxu0 0.0
    %147 = vmatpush1.msra.mxu0 0.0
    %148 = vmatprep.subr.mxu0 0.0
    %149 = vmatpush1.msra.mxu0 0.0
    %150 = vmatprep.subr.mxu0 0.0
    %151 = vmatpush1.msra.mxu0 0.0
    %152 = vmatprep.subr.mxu0 0.0
    %153 = vmatpush1.msra.mxu0 0.0
    %154 = vmatprep.subr.mxu0 0.0
    %155 = vmatpush1.msra.mxu0 0.0
    %156 = vmatprep.subr.mxu0 0.0
    %157 = vmatpush1.msra.mxu0 0.0
    %158 = vmatprep.subr.mxu0 0.0
    %159 = vmatpush1.msra.mxu0 0.0
    %160 = vmatprep.subr.mxu0 0.0
    %161 = vmatpush1.msra.mxu0 0.0
    %162 = vmatprep.subr.mxu0 %v49
    %163 = vmatpush1.msra.mxu0 %v48
    %164 = vmatprep.subr.mxu0 %v47
    %165 = vmatpush1.msra.mxu0 %v46
    %166 = vmatprep.subr.mxu0 0.0
    %167 = vmatpush2.msra.mxu0 0.0
    %168 = vmatprep.subr.mxu0 0.0
    %169 = vmatpush2.msra.mxu0 0.0
    %170 = vmatprep.subr.mxu0 0.0
    %171 = vmatpush2.msra.mxu0 0.0
    %172 = vmatprep.subr.mxu0 0.0
    %173 = vmatpush2.msra.mxu0 0.0
    %174 = vmatprep.subr.mxu0 0.0
    %175 = vmatpush2.msra.mxu0 0.0
    %176 = vmatprep.subr.mxu0 0.0
    %177 = vmatpush2.msra.mxu0 0.0
    %178 = vmatprep.subr.mxu0 0.0
    %179 = vmatpush2.msra.mxu0 0.0
    %180 = vmatprep.subr.mxu0 0.0
    %181 = vmatpush2.msra.mxu0 0.0
    %182 = vmatprep.subr.mxu0 0.0
    %183 = vmatpush2.msra.mxu0 0.0
    %184 = vmatprep.subr.mxu0 0.0
    %185 = vmatpush2.msra.mxu0 0.0
    %186 = vmatprep.subr.mxu0 0.0
    %187 = vmatpush2.msra.mxu0 0.0
    %188 = vmatprep.subr.mxu0 0.0
    %189 = vmatpush2.msra.mxu0 0.0
    %190 = vmatprep.subr.mxu0 0.0
    %191 = vmatpush2.msra.mxu0 0.0
    %192 = vmatprep.subr.mxu0 0.0
    %193 = vmatpush2.msra.mxu0 0.0
    %194 = vmatprep.subr.mxu0 0.0
    %195 = vmatpush2.msra.mxu0 0.0
    %196 = vmatprep.subr.mxu0 0.0
    %197 = vmatpush2.msra.mxu0 0.0
    %198 = vmatprep.mubr.f32.mxu0 0.0
    %199 = vmatmul.mubr.f32.gmra.mxu0 %v132
    %v200 = vpop.f32.mrf.mxu0
    %v201 = vadd.f32 %v123, %v200
    %v202 = vpop.f32.mrf.mxu0
    %v203 = vadd.f32 %v127, %v202
    %204 = vdwg.mxu0
    %v205 = vmax.f32 %v201, 0.0
    %v206 = vmax.f32 %v203, 0.0
    %207 = vmatprep.subr.mxu0 0.0
    %208 = vmatpush1.msra.mxu0 %v70
    %209 = vmatprep.subr.mxu0 0.0
    %210 = vmatpush1.msra.mxu0 %v69
    %211 = vmatprep.subr.mxu0 0.0
    %212 = vmatpush1.msra.mxu0 %v68
    %213 = vmatprep.subr.mxu0 0.0
    %214 = vmatpush1.msra.mxu0 %v67
    %215 = vmatprep.subr.mxu0 0.0
    %216 = vmatpush1.msra.mxu0 %v66
    %217 = vmatprep.subr.mxu0 0.0
    %218 = vmatpush1.msra.mxu0 %v65
    %219 = vmatprep.subr.mxu0 0.0
    %220 = vmatpush1.msra.mxu0 %v64
    %221 = vmatprep.subr.mxu0 0.0
    %222 = vmatpush1.msra.mxu0 %v63
    %223 = vmatprep.subr.mxu0 0.0
    %224 = vmatpush1.msra.mxu0 %v62
    %225 = vmatprep.subr.mxu0 0.0
    %226 = vmatpush1.msra.mxu0 %v61
    %227 = vmatprep.subr.mxu0 0.0
    %228 = vmatpush1.msra.mxu0 %v60
    %229 = vmatprep.subr.mxu0 0.0
    %230 = vmatpush1.msra.mxu0 %v59
    %231 = vmatprep.subr.mxu0 0.0
    %232 = vmatpush1.msra.mxu0 %v58
    %233 = vmatprep.subr.mxu0 0.0
    %234 = vmatpush1.msra.mxu0 %v57
    %235 = vmatprep.subr.mxu0 0.0
    %236 = vmatpush1.msra.mxu0 %v56
    %237 = vmatprep.subr.mxu0 0.0
    %238 = vmatpush1.msra.mxu0 %v55
    %239 = vmatprep.subr.mxu0 0.0
    %240 = vmatpush2.msra.mxu0 %v86
    %241 = vmatprep.subr.mxu0 0.0
    %242 = vmatpush2.msra.mxu0 %v85
    %243 = vmatprep.subr.mxu0 0.0
    %244 = vmatpush2.msra.mxu0 %v84
    %245 = vmatprep.subr.mxu0 0.0
    %246 = vmatpush2.msra.mxu0 %v83
    %247 = vmatprep.subr.mxu0 0.0
    %248 = vmatpush2.msra.mxu0 %v82
    %249 = vmatprep.subr.mxu0 0.0
    %250 = vmatpush2.msra.mxu0 %v81
    %251 = vmatprep.subr.mxu0 0.0
    %252 = vmatpush2.msra.mxu0 %v80
    %253 = vmatprep.subr.mxu0 0.0
    %254 = vmatpush2.msra.mxu0 %v79
    %255 = vmatprep.subr.mxu0 0.0
    %256 = vmatpush2.msra.mxu0 %v78
    %257 = vmatprep.subr.mxu0 0.0
    %258 = vmatpush2.msra.mxu0 %v77
    %259 = vmatprep.subr.mxu0 0.0
    %260 = vmatpush2.msra.mxu0 %v76
    %261 = vmatprep.subr.mxu0 0.0
    %262 = vmatpush2.msra.mxu0 %v75
    %263 = vmatprep.subr.mxu0 0.0
    %264 = vmatpush2.msra.mxu0 %v74
    %265 = vmatprep.subr.mxu0 0.0
    %266 = vmatpush2.msra.mxu0 %v73
    %267 = vmatprep.subr.mxu0 0.0
    %268 = vmatpush2.msra.mxu0 %v72
    %269 = vmatprep.subr.mxu0 0.0
    %270 = vmatpush2.msra.mxu0 %v71
    %271 = vmatprep.mubr.f32.mxu0 %v206
    %272 = vmatmul.mubr.f32.gmra.mxu0 %v205
    %v273 = vpop.f32.mrf.mxu0
    %v274 = vadd.f32 %v52, %v273
    %v275 = vpop.f32.mrf.mxu0
    %276 = vdwg.mxu0
    %v277 = vmax.f32 %v274, 0.0
    %278 = vmatprep.subr.mxu0 0.0
    %279 = vmatpush1.msra.mxu0 %v102
    %280 = vmatprep.subr.mxu0 0.0
    %281 = vmatpush1.msra.mxu0 %v101
    %282 = vmatprep.subr.mxu0 0.0
    %283 = vmatpush1.msra.mxu0 %v100
    %284 = vmatprep.subr.mxu0 0.0
    %285 = vmatpush1.msra.mxu0 %v99
    %286 = vmatprep.subr.mxu0 0.0
    %287 = vmatpush1.msra.mxu0 %v98
    %288 = vmatprep.subr.mxu0 0.0
    %289 = vmatpush1.msra.mxu0 %v97
    %290 = vmatprep.subr.mxu0 0.0
    %291 = vmatpush1.msra.mxu0 %v96
    %292 = vmatprep.subr.mxu0 0.0
    %293 = vmatpush1.msra.mxu0 %v95
    %294 = vmatprep.subr.mxu0 0.0
    %295 = vmatpush1.msra.mxu0 %v94
    %296 = vmatprep.subr.mxu0 0.0
    %297 = vmatpush1.msra.mxu0 %v93
    %298 = vmatprep.subr.mxu0 0.0
    %299 = vmatpush1.msra.mxu0 %v92
    %300 = vmatprep.subr.mxu0 0.0
    %301 = vmatpush1.msra.mxu0 %v91
    %302 = vmatprep.subr.mxu0 0.0
    %303 = vmatpush1.msra.mxu0 %v90
    %304 = vmatprep.subr.mxu0 0.0
    %305 = vmatpush1.msra.mxu0 %v89
    %306 = vmatprep.subr.mxu0 0.0
    %307 = vmatpush1.msra.mxu0 %v88
    %308 = vmatprep.subr.mxu0 0.0
    %309 = vmatpush1.msra.mxu0 %v87
    %310 = vmatprep.subr.mxu0 0.0
    %311 = vmatpush2.msra.mxu0 0.0
    %312 = vmatprep.subr.mxu0 0.0
    %313 = vmatpush2.msra.mxu0 0.0
    %314 = vmatprep.subr.mxu0 0.0
    %315 = vmatpush2.msra.mxu0 0.0
    %316 = vmatprep.subr.mxu0 0.0
    %317 = vmatpush2.msra.mxu0 0.0
    %318 = vmatprep.subr.mxu0 0.0
    %319 = vmatpush2.msra.mxu0 0.0
    %320 = vmatprep.subr.mxu0 0.0
    %321 = vmatpush2.msra.mxu0 0.0
    %322 = vmatprep.subr.mxu0 0.0
    %323 = vmatpush2.msra.mxu0 0.0
    %324 = vmatprep.subr.mxu0 0.0
    %325 = vmatpush2.msra.mxu0 0.0
    %326 = vmatprep.subr.mxu0 0.0
    %327 = vmatpush2.msra.mxu0 0.0
    %328 = vmatprep.subr.mxu0 0.0
    %329 = vmatpush2.msra.mxu0 0.0
    %330 = vmatprep.subr.mxu0 0.0
    %331 = vmatpush2.msra.mxu0 0.0
    %332 = vmatprep.subr.mxu0 0.0
    %333 = vmatpush2.msra.mxu0 0.0
    %334 = vmatprep.subr.mxu0 0.0
    %335 = vmatpush2.msra.mxu0 0.0
    %336 = vmatprep.subr.mxu0 0.0
    %337 = vmatpush2.msra.mxu0 0.0
    %338 = vmatprep.subr.mxu0 0.0
    %339 = vmatpush2.msra.mxu0 0.0
    %340 = vmatprep.subr.mxu0 0.0
    %341 = vmatpush2.msra.mxu0 0.0
    %342 = vmatprep.mubr.f32.mxu0 0.0
    %343 = vmatmul.mubr.f32.gmra.mxu0 %v277
    %v344 = vpop.f32.mrf.mxu0
    %v345 = vadd.f32 %v53, %v344
    %v346 = vpop.f32.mrf.mxu0
    %347 = vdwg.mxu0
    %v348 = vmax.f32 %v345, 0.0
    %349 = vmatprep.subr.mxu0 0.0
    %350 = vmatpush1.msra.mxu0 %v118
    %351 = vmatprep.subr.mxu0 0.0
    %352 = vmatpush1.msra.mxu0 %v117
    %353 = vmatprep.subr.mxu0 0.0
    %354 = vmatpush1.msra.mxu0 %v116
    %355 = vmatprep.subr.mxu0 0.0
    %356 = vmatpush1.msra.mxu0 %v115
    %357 = vmatprep.subr.mxu0 0.0
    %358 = vmatpush1.msra.mxu0 %v114
    %359 = vmatprep.subr.mxu0 0.0
    %360 = vmatpush1.msra.mxu0 %v113
    %361 = vmatprep.subr.mxu0 0.0
    %362 = vmatpush1.msra.mxu0 %v112
    %363 = vmatprep.subr.mxu0 0.0
    %364 = vmatpush1.msra.mxu0 %v111
    %365 = vmatprep.subr.mxu0 0.0
    %366 = vmatpush1.msra.mxu0 %v110
    %367 = vmatprep.subr.mxu0 0.0
    %368 = vmatpush1.msra.mxu0 %v109
    %369 = vmatprep.subr.mxu0 0.0
    %370 = vmatpush1.msra.mxu0 %v108
    %371 = vmatprep.subr.mxu0 0.0
    %372 = vmatpush1.msra.mxu0 %v107
    %373 = vmatprep.subr.mxu0 0.0
    %374 = vmatpush1.msra.mxu0 %v106
    %375 = vmatprep.subr.mxu0 0.0
    %376 = vmatpush1.msra.mxu0 %v105
    %377 = vmatprep.subr.mxu0 0.0
    %378 = vmatpush1.msra.mxu0 %v104
    %379 = vmatprep.subr.mxu0 0.0
    %380 = vmatpush1.msra.mxu0 %v103
    %381 = vmatprep.subr.mxu0 0.0
    %382 = vmatpush2.msra.mxu0 0.0
    %383 = vmatprep.subr.mxu0 0.0
    %384 = vmatpush2.msra.mxu0 0.0
    %385 = vmatprep.subr.mxu0 0.0
    %386 = vmatpush2.msra.mxu0 0.0
    %387 = vmatprep.subr.mxu0 0.0
    %388 = vmatpush2.msra.mxu0 0.0
    %389 = vmatprep.subr.mxu0 0.0
    %390 = vmatpush2.msra.mxu0 0.0
    %391 = vmatprep.subr.mxu0 0.0
    %392 = vmatpush2.msra.mxu0 0.0
    %393 = vmatprep.subr.mxu0 0.0
    %394 = vmatpush2.msra.mxu0 0.0
    %395 = vmatprep.subr.mxu0 0.0
    %396 = vmatpush2.msra.mxu0 0.0
    %397 = vmatprep.subr.mxu0 0.0
    %398 = vmatpush2.msra.mxu0 0.0
    %399 = vmatprep.subr.mxu0 0.0
    %400 = vmatpush2.msra.mxu0 0.0
    %401 = vmatprep.subr.mxu0 0.0
    %402 = vmatpush2.msra.mxu0 0.0
    %403 = vmatprep.subr.mxu0 0.0
    %404 = vmatpush2.msra.mxu0 0.0
    %405 = vmatprep.subr.mxu0 0.0
    %406 = vmatpush2.msra.mxu0 0.0
    %407 = vmatprep.subr.mxu0 0.0
    %408 = vmatpush2.msra.mxu0 0.0
    %409 = vmatprep.subr.mxu0 0.0
    %410 = vmatpush2.msra.mxu0 0.0
    %411 = vmatprep.subr.mxu0 0.0
    %412 = vmatpush2.msra.mxu0 0.0
    %413 = vmatprep.mubr.f32.mxu0 0.0
    %414 = vmatmul.mubr.f32.gmra.mxu0 %v348
    %v415 = vpop.f32.mrf.mxu0
    %v416 = vadd.f32 %v54, %v415
    %v417 = vpop.f32.mrf.mxu0
    %418 = vdwg.mxu0
    %v419 = vmax.f32 %v416, 0.0
    %420 = vst [vmem:[%s2] sm:$0xff] %v419
    %v421 = vrot.slane %v419, 4
    %v422 = vmax.f32 %v419, %v421
    %v423 = vrot.slane %v422, 2
    %v424 = vmax.f32 %v422, %v423
    %v425 = vrot.slane %v424, 1
    %v426 = vmax.f32 %v424, %v425
    %v427 = vld [vmem:[#allocation2] sm:$0x1]
    %v428 = vmax.f32 %v427, %v426
    %v429 = vsub.f32 %v427, %v428
    %v430 = vmul.f32 %v429, 1.442695
    %v431 = vpow.pop %v430
    %v432 = vld [vmem:[#allocation3] sm:$0x1]
    %v433 = vmul.f32 %v431, %v432
    %v435 = vlaneseq
    %v436 = vshrl.u32 %v435, 7
    %v437 = vsub.s32 0, %v436
    %v438 = vrot.slane %v428, %v437
    %v440 = vsub.f32 %v419, %v438
    %v441 = vmul.f32 %v440, 1.442695
    %v442 = vpow.pop %v441
    %v443 = vrot.slane %v442, 4
    %v444 = vadd.f32 %v442, %v443
    %v445 = vrot.slane %v444, 2
    %v446 = vadd.f32 %v444, %v445
    %v447 = vrot.slane %v446, 1
    %v448 = vadd.f32 %v446, %v447
    %v449 = vadd.f32 %v433, %v448
    %450 = vst [vmem:[#allocation3] sm:$0x1] %v449
    %451 = vst [vmem:[#allocation2] sm:$0x1] %v428
    // Predicated region
    $region22: #{actor_forward.2} parent=1 // pred_check
      %p452 = pneg %p39
    $region23: #{actor_forward.2} parent=1 // pred_check_branch
      %454 = sbr.rel (%p452) target = $region25
    $region24: #{actor_forward.2} parent=1 // pred_region
      %v455 = vld [vmem:[#allocation2] sm:$0x1]
      %456 = vst [vmem:[%s3] sm:$0x1] %v455
      %v457 = vld [vmem:[#allocation3] sm:$0x1]
      %458 = vst [vmem:[%s3 + $0x1] sm:$0x1] %v457
    $region25: #{actor_forward.2} parent=1 // pred_fallthru
      _
    // Predicated region
    $region26: #{actor_forward.2} parent=1 // pred_check
      _
    $region27: #{actor_forward.2} parent=1 // pred_check_branch
      %460 = sbr.rel (0) target = $region29
    $region28: #{actor_forward.2} parent=1 // pred_region
      _
    $region29: #{actor_forward.2} parent=1 // pred_fallthru
      _
    // Predicated region
    $region30: #{actor_forward.2} parent=1 // pred_check
      _
    $region31: #{actor_forward.2} parent=1 // pred_check_branch
      %462 = sbr.rel (0) target = $region33
    $region32: #{actor_forward.2} parent=1 // pred_region
      _
    $region33: #{actor_forward.2} parent=1 // pred_fallthru
      _
    // Predicated region
    $region34: #{actor_forward.2} parent=1 // pred_check
      _
    $region35: #{actor_forward.2} parent=1 // pred_check_branch
      %464 = sbr.rel (0) target = $region37
    $region36: #{actor_forward.2} parent=1 // pred_region
      _
    $region37: #{actor_forward.2} parent=1 // pred_fallthru
      _
    // Predicated region
    $region38: #{actor_forward.2} parent=1 // pred_check
      _
    $region39: #{actor_forward.2} parent=1 // pred_check_branch
      %466 = sbr.rel (0) target = $region41
    $region40: #{actor_forward.2} parent=1 // pred_region
      _
    $region41: #{actor_forward.2} parent=1 // pred_fallthru
      _
    %467 = vsyncpa [#allocation5], 1
    %468 = vsyncpa [#allocation7], 1

</llo_original>
